<compile_context>
chip_gen: v7x
topology: tpu7x:2x2x1
jax: 0.10.0
libtpu: 0.0.40
codegen_flags: <defaults>
</compile_context>

<pallas_src>
import functools

import jax
import jax.numpy as jnp
from jax.experimental import pallas as pl
from jax.experimental.pallas import tpu as pltpu

MARGIN = 2.0
_EPS = 1e-6                      # matches F.pairwise_distance default eps
_FAST_PATH_BYTES = 1 << 20       # below this, plain XLA beats a pallas_call


def _device_params():
    """Returns (num_tensorcores, vmem_tile_budget_bytes) for the local device."""
    kind = ""
    try:
        kind = jax.devices()[0].device_kind.lower()
    except Exception:  # pragma: no cover - defensive
        pass
    if "v5p" in kind:                      # 2 TCs (megacore), 128 MiB VMEM
        return 2, 22 << 20
    if "v5" in kind:                       # v5e / v5 lite: 1 TC, 16 MiB default scoped
        return 1, 12 << 20
    if "v6" in kind:                       # v6e (Trillium): 1 TC, 32 MiB default scoped
        return 1, 22 << 20
    if "v4" in kind:                       # 2 TCs (megacore)
        return 2, 22 << 20
    if "v7" in kind or "7x" in kind:       # v7x: 2 TCs, 64 MiB physical / 32 MiB default
        return 2, 22 << 20
    return 1, 16 << 20                     # unknown: conservative


def _pick_tile_rows(batch, feat, itemsize, budget_bytes, cap=16384):
    """Largest sublane-aligned row count whose true VMEM footprint fits the budget."""
    dpad = -(-feat // 128) * 128           # lane-padded feature width
    row_bytes = (
        2 * 2 * dpad * itemsize            # 2 input tiles x 2 pipeline buffers
        + 2 * 128 * 4                      # (tb,1) f32 label, 128-lane padded, double-buffered
        + 128 * 4                          # (tb,1) f32 accumulator scratch (lane padded)
        + 3 * dpad * 4                     # headroom: f32 casts + `diff` intermediate
    )
    sub = max(8, 32 // max(1, itemsize))   # sublane alignment: 8 f32 / 16 bf16 / 32 int8
    tb = budget_bytes // row_bytes
    tb = min(tb, cap, -(-batch // sub) * sub)   # no point tiling past the padded batch
    return max(sub, (tb // sub) * sub)


def _contrastive_kernel(o1_ref, o2_ref, lab_ref, out_ref, acc_ref, *, batch, margin):
    i = pl.program_id(1)                   # tile index within this core
    n_i = pl.num_programs(1)

    @pl.when(i == 0)
    def _zero():                           # init resident per-row accumulator
        acc_ref[...] = jnp.zeros_like(acc_ref)

    o1 = o1_ref[...].astype(jnp.float32)   # (TB, D)
    o2 = o2_ref[...].astype(jnp.float32)   # (TB, D)
    lab = lab_ref[...].astype(jnp.float32)  # (TB, 1)

    diff = o1 - o2 + _EPS                  # torch adds eps before the norm
    dist2 = jnp.sum(diff * diff, axis=-1, keepdims=True)  # (TB, 1) == d^2 (reused directly)
    dist = jnp.sqrt(dist2)                 # only needed for the hinge term
    hinge = jnp.maximum(margin - dist, 0.0)
    per_row = lab * dist2 + (1.0 - lab) * (hinge * hinge)  # (TB, 1)

    # Mask rows past the end of the batch (ragged tail tile and the clamped
    # duplicate tile the second core may receive).  Select, not multiply, so
    # NaN/Inf garbage in padded rows is safe.
    tb = o1_ref.shape[0]
    tile = pl.program_id(0) * n_i + i      # global, *unclamped* tile id
    row = jax.lax.broadcasted_iota(jnp.int32, per_row.shape, 0) + tile * tb
    per_row = jnp.where(row < batch, per_row, 0.0)

    # Elementwise accumulate; the sublane reduce + (1,1) store happen once.
    acc_ref[...] += per_row

    @pl.when(i == n_i - 1)
    def _finish():
        out_ref[...] = jnp.sum(acc_ref[...], axis=0, keepdims=True)


def _reference_jnp(o1, o2, lab, margin):
    o1 = o1.astype(jnp.float32)
    o2 = o2.astype(jnp.float32)
    d = jnp.sqrt(jnp.sum((o1 - o2 + _EPS) ** 2, axis=-1, keepdims=True))
    return jnp.mean(lab * d * d + (1.0 - lab) * jnp.square(jnp.maximum(margin - d, 0.0)))


def custom_contrastive_loss(output1, output2, label, *, margin=MARGIN,
                            tile_rows=None, force_pallas=False):
    """output1, output2: (B, D); label: (B,) or (B, 1). Returns scalar float32 loss."""
    B, D = output1.shape
    label = jnp.reshape(label, (B, 1)).astype(jnp.float32)
    itemsize = output1.dtype.itemsize

    # Tiny inputs: plain XLA fusion beats any pallas_call (launch/DMA overhead).
    total_in_bytes = 2 * B * D * itemsize + B * 4
    if not force_pallas and total_in_bytes < _FAST_PATH_BYTES:
        return _reference_jnp(output1, output2, label, float(margin))

    num_cores, budget = _device_params()
    tb = tile_rows if tile_rows is not None else _pick_tile_rows(B, D, itemsize, budget)
    total_tiles = pl.cdiv(B, tb)
    num_cores = max(1, min(num_cores, total_tiles))   # never duplicate a lone tile
    tiles_per_core = pl.cdiv(total_tiles, num_cores)
    last_tile = total_tiles - 1

    def row_map(c, i):
        # Clamp: a core's out-of-range tile re-reads the last tile; its
        # contribution is masked to zero inside the kernel.
        return (jnp.minimum(c * tiles_per_core + i, last_tile), 0)

    cost = pl.CostEstimate(
        flops=int(5 * B * D + 8 * B),
        transcendentals=int(B),
        bytes_accessed=int(2 * B * D * itemsize + B * 4 + num_cores * 4),
    )

    partials = pl.pallas_call(
        functools.partial(_contrastive_kernel, batch=B, margin=float(margin)),
        out_shape=jax.ShapeDtypeStruct((num_cores, 1), jnp.float32),
        grid=(num_cores, tiles_per_core),
        in_specs=[
            pl.BlockSpec((tb, D), row_map),
            pl.BlockSpec((tb, D), row_map),
            pl.BlockSpec((tb, 1), row_map),
        ],
        out_specs=pl.BlockSpec((1, 1), lambda c, i: (c, 0)),
        scratch_shapes=[pltpu.VMEM((tb, 1), jnp.float32)],
        compiler_params=pltpu.CompilerParams(
            dimension_semantics=("parallel", "arbitrary")),
        cost_estimate=cost,
    )(output1, output2, label)

    return jnp.sum(partials) / jnp.float32(B)


if __name__ == "__main__":
    key = jax.random.PRNGKey(0)
    k1, k2, k3 = jax.random.split(key, 3)

    def reference(o1, o2, lab, margin=MARGIN):
        lab = jnp.reshape(lab, (o1.shape[0], 1)).astype(jnp.float32)
        d = jnp.sqrt(jnp.sum((o1 - o2 + _EPS) ** 2, axis=-1, keepdims=True))
        return jnp.mean(lab * d ** 2 + (1.0 - lab) * jnp.clip(margin - d, 0.0) ** 2)

    # Small shape consistent with the module (pairwise embeddings + binary label).
    B, D = 8, 32
    o1 = jax.random.normal(k1, (B, D), dtype=jnp.float32)
    o2 = jax.random.normal(k2, (B, D), dtype=jnp.float32)
    lab = jax.random.bernoulli(k3, 0.5, (B, 1)).astype(jnp.float32)

    loss = custom_contrastive_loss(o1, o2, lab, force_pallas=True)
    jax.block_until_ready(loss)
    ref = reference(o1, o2, lab)
    assert jnp.allclose(loss, ref, rtol=1e-5, atol=1e-5), (loss, ref)

    # Ragged multi-tile check: forces several grid steps to exercise the tiled
    # sum accumulation, deferred reduction, tail masking and the core split.
    B2, D2 = 300, 96
    o1b = jax.random.normal(k1, (B2, D2), dtype=jnp.float32)
    o2b = jax.random.normal(k2, (B2, D2), dtype=jnp.float32)
    labb = jax.random.bernoulli(k3, 0.5, (B2, 1)).astype(jnp.float32)
    loss2 = custom_contrastive_loss(o1b, o2b, labb, tile_rows=64, force_pallas=True)
    jax.block_until_ready(loss2)
    ref2 = reference(o1b, o2b, labb)
    assert jnp.allclose(loss2, ref2, rtol=1e-4, atol=1e-4), (loss2, ref2)

    # Small-input fast path (plain XLA) returns the same numbers.
    loss3 = custom_contrastive_loss(o1, o2, lab)
    jax.block_until_ready(loss3)
    assert jnp.allclose(loss3, ref, rtol=1e-5, atol=1e-5), (loss3, ref)

    print("KERNEL_OK")
</pallas_src>

<mosaic_0001>
module attributes {stable_mosaic.version = 11 : i64} {
  func.func @_contrastive_kernel(%arg0: i32, %arg1: i32, %arg2: memref<8x32xf32, #tpu.memory_space<vmem>>, %arg3: memref<8x32xf32, #tpu.memory_space<vmem>>, %arg4: memref<8x1xf32, #tpu.memory_space<vmem>>, %arg5: memref<1x1xf32, #tpu.memory_space<vmem>>, %arg6: memref<8x1xf32, #tpu.memory_space<vmem>>) attributes {dimension_semantics = [#tpu.dimension_semantics<parallel>, #tpu.dimension_semantics<arbitrary>], iteration_bounds = array<i64: 1, 1>, scalar_prefetch = 0 : i64, scratch_operands = 1 : i64, tpu.core_type = #tpu.core_type<tc>, window_params = [{transform_indices = @transform_0, window_bounds = array<i64: 8, 32>}, {transform_indices = @transform_1, window_bounds = array<i64: 8, 32>}, {transform_indices = @transform_2, window_bounds = array<i64: 8, 1>}, {transform_indices = @transform_3, window_bounds = array<i64: 1, 1>}]} {
    %c0_i32 = arith.constant 0 : i32
    %0 = arith.cmpi eq, %arg1, %c0_i32 : i32
    %1 = arith.extui %0 : i1 to i32
    %c0_i32_0 = arith.constant 0 : i32
    %2 = arith.cmpi ne, %1, %c0_i32_0 : i32
    scf.if %2 {
      %cst_18 = arith.constant 0.000000e+00 : f32
      %39 = vector.broadcast %cst_18 : f32 to vector<8x1xf32>
      %c0_19 = arith.constant 0 : index
      %c0_20 = arith.constant 0 : index
      %40 = vector.load %arg6[%c0_19, %c0_20] : memref<8x1xf32, #tpu.memory_space<vmem>>, vector<8x1xf32>
      tpu.vector_store %arg6[%c0_19, %c0_20], %39 {strides = array<i32>} : memref<8x1xf32, #tpu.memory_space<vmem>>, vector<8x1xf32>,
    } else {
    }
    %c0 = arith.constant 0 : index
    %c0_1 = arith.constant 0 : index
    %3 = vector.load %arg2[%c0, %c0_1] : memref<8x32xf32, #tpu.memory_space<vmem>>, vector<8x32xf32>
    %c0_2 = arith.constant 0 : index
    %c0_3 = arith.constant 0 : index
    %4 = vector.load %arg3[%c0_2, %c0_3] : memref<8x32xf32, #tpu.memory_space<vmem>>, vector<8x32xf32>
    %c0_4 = arith.constant 0 : index
    %c0_5 = arith.constant 0 : index
    %5 = vector.load %arg4[%c0_4, %c0_5] : memref<8x1xf32, #tpu.memory_space<vmem>>, vector<8x1xf32>
    %6 = arith.subf %3, %4 : vector<8x32xf32>
    %cst = arith.constant 9.99999997E-7 : f32
    %7 = vector.broadcast %cst : f32 to vector<8x32xf32>
    %8 = arith.addf %6, %7 : vector<8x32xf32>
    %9 = arith.mulf %8, %8 : vector<8x32xf32>
    %cst_6 = arith.constant dense<0.000000e+00> : vector<8xf32>
    %10 = vector.multi_reduction <add>, %9, %cst_6 [1] : vector<8x32xf32> to vector<8xf32>
    %11 = vector.shape_cast %10 : vector<8xf32> to vector<8x1xf32>
    %12 = math.sqrt %11 : vector<8x1xf32>
    %cst_7 = arith.constant 2.000000e+00 : f32
    %13 = vector.broadcast %cst_7 : f32 to vector<8x1xf32>
    %14 = arith.subf %13, %12 : vector<8x1xf32>
    %cst_8 = arith.constant 0.000000e+00 : f32
    %15 = vector.broadcast %cst_8 : f32 to vector<8x1xf32>
    %16 = arith.maximumf %14, %15 : vector<8x1xf32>
    %17 = arith.mulf %5, %11 : vector<8x1xf32>
    %cst_9 = arith.constant 1.000000e+00 : f32
    %18 = vector.broadcast %cst_9 : f32 to vector<8x1xf32>
    %19 = arith.subf %18, %5 : vector<8x1xf32>
    %20 = arith.mulf %16, %16 : vector<8x1xf32>
    %21 = arith.mulf %19, %20 : vector<8x1xf32>
    %22 = arith.addf %17, %21 : vector<8x1xf32>
    %c1_i32 = arith.constant 1 : i32
    %23 = arith.muli %arg0, %c1_i32 : i32
    %24 = arith.addi %23, %arg1 : i32
    %25 = tpu.iota {dimensions = array<i32: 0>} : vector<8x1xi32>
    %c8_i32 = arith.constant 8 : i32
    %26 = arith.muli %24, %c8_i32 : i32
    %27 = vector.broadcast %26 : i32 to vector<8x1xi32>
    %28 = arith.addi %25, %27 : vector<8x1xi32>
    %c8_i32_10 = arith.constant 8 : i32
    %29 = vector.broadcast %c8_i32_10 : i32 to vector<8x1xi32>
    %30 = arith.cmpi slt, %28, %29 : vector<8x1xi32>
    %cst_11 = arith.constant 0.000000e+00 : f32
    %31 = vector.broadcast %cst_11 : f32 to vector<8x1xf32>
    %32 = arith.select %30, %22, %31 : vector<8x1xi1>, vector<8x1xf32>
    %c0_12 = arith.constant 0 : index
    %c0_13 = arith.constant 0 : index
    %33 = vector.load %arg6[%c0_12, %c0_13] : memref<8x1xf32, #tpu.memory_space<vmem>>, vector<8x1xf32>
    %34 = arith.addf %33, %32 : vector<8x1xf32>
    %c0_14 = arith.constant 0 : index
    %c0_15 = arith.constant 0 : index
    %35 = vector.load %arg6[%c0_14, %c0_15] : memref<8x1xf32, #tpu.memory_space<vmem>>, vector<8x1xf32>
    tpu.vector_store %arg6[%c0_14, %c0_15], %34 {strides = array<i32>} : memref<8x1xf32, #tpu.memory_space<vmem>>, vector<8x1xf32>,
    %c0_i32_16 = arith.constant 0 : i32
    %36 = arith.cmpi eq, %arg1, %c0_i32_16 : i32
    %37 = arith.extui %36 : i1 to i32
    %c0_i32_17 = arith.constant 0 : i32
    %38 = arith.cmpi ne, %37, %c0_i32_17 : i32
    scf.if %38 {
      %c0_18 = arith.constant 0 : index
      %c0_19 = arith.constant 0 : index
      %39 = vector.load %arg6[%c0_18, %c0_19] : memref<8x1xf32, #tpu.memory_space<vmem>>, vector<8x1xf32>
      %cst_20 = arith.constant dense<0.000000e+00> : vector<1xf32>
      %40 = vector.multi_reduction <add>, %39, %cst_20 [0] : vector<8x1xf32> to vector<1xf32>
      %41 = vector.shape_cast %40 : vector<1xf32> to vector<1x1xf32>
      %c0_21 = arith.constant 0 : index
      %c0_22 = arith.constant 0 : index
      %42 = vector.load %arg5[%c0_21, %c0_22] : memref<1x1xf32, #tpu.memory_space<vmem>>, vector<1x1xf32>
      tpu.vector_store %arg5[%c0_21, %c0_22], %41 {strides = array<i32>} : memref<1x1xf32, #tpu.memory_space<vmem>>, vector<1x1xf32>,
    } else {
    }
    return
  }
  func.func @transform_0(%arg0: i32, %arg1: i32) -> (i32, i32) {
    %c1_i32 = arith.constant 1 : i32
    %0 = arith.muli %arg0, %c1_i32 : i32
    %1 = arith.addi %0, %arg1 : i32
    %c0_i32 = arith.constant 0 : i32
    %2 = arith.minsi %1, %c0_i32 : i32
    %c0_i32_0 = arith.constant 0 : i32
    %c0_i32_1 = arith.constant 0 : i32
    return %2, %c0_i32_0 : i32, i32
  }
  func.func @transform_1(%arg0: i32, %arg1: i32) -> (i32, i32) {
    %c1_i32 = arith.constant 1 : i32
    %0 = arith.muli %arg0, %c1_i32 : i32
    %1 = arith.addi %0, %arg1 : i32
    %c0_i32 = arith.constant 0 : i32
    %2 = arith.minsi %1, %c0_i32 : i32
    %c0_i32_0 = arith.constant 0 : i32
    %c0_i32_1 = arith.constant 0 : i32
    return %2, %c0_i32_0 : i32, i32
  }
  func.func @transform_2(%arg0: i32, %arg1: i32) -> (i32, i32) {
    %c1_i32 = arith.constant 1 : i32
    %0 = arith.muli %arg0, %c1_i32 : i32
    %1 = arith.addi %0, %arg1 : i32
    %c0_i32 = arith.constant 0 : i32
    %2 = arith.minsi %1, %c0_i32 : i32
    %c0_i32_0 = arith.constant 0 : i32
    %c0_i32_1 = arith.constant 0 : i32
    return %2, %c0_i32_0 : i32, i32
  }
  func.func @transform_3(%arg0: i32, %arg1: i32) -> (i32, i32) {
    %c0_i32 = arith.constant 0 : i32
    %c0_i32_0 = arith.constant 0 : i32
    return %arg0, %c0_i32 : i32, i32
  }
}

</mosaic_0001>

<llo_original>
// kernel: tpu_custom_call.1
$region0: #{tpu_custom_call.1}
  #allocation0 [shape = 'u32[]', space=smem, size = 0x4, offset = 0x4, fixed_abs, tag = 'smem constant byte address 0x4 - core index']
  #allocation1 [shape = 'u32[144,128]{1,0:T(1,128)}', space=vmem, size = 0x12000, scoped, tag = 'internal scratch']
  #allocation2 [shape = 'f32[8,1]{1,0:T(8,128)}', space=vmem, size = 0x1000, scoped, tag = 'scratch operand']
  %s0 = inlined_call_operand.vmem [shape: f32[8,32], index: 0, kind: input, shape index: {}]
  %s1 = inlined_call_operand.hbm [shape: f32[8,32], index: 1, kind: input, shape index: {}]
  %s2 = inlined_call_operand.vmem [shape: f32[8,1], index: 2, kind: input, shape index: {}]
  %s3 = inlined_call_operand.hbm [shape: f32[1,1], index: 3, kind: output, shape index: {}]
  %s4 = sld [smem:[#allocation0]]
  $region34: #{tpu_custom_call.1} parent=0
    _
  %s6 = ssub.s32 1, %s4
  %s7 = scalar_select 0, %s6, %s4
  $region1: #{tpu_custom_call.1} parent=0
    #allocation3 [shape = 'u8[4096]{0}', space=vmem, size = 0x1000, scoped, tag = 'input window, operand 1, single buffered']
    #allocation4 [shape = 's32[1]{0}', space=sflag, size = 0x4, scoped, tag = 'scoped memory for tpu_custom_call.1']
    #allocation5 [shape = 's32[1]{0}', space=sflag, size = 0x4, scoped, tag = 'scoped memory for tpu_custom_call.1']
    #allocation6 [shape = 'u8[512]{0}', space=vmem, size = 0x400, scoped, tag = 'output window, operand 0, single buffered']
    %8 = vsyncpa [#allocation4], 0
    %9 = vsyncpa [#allocation5], 0
    // Predicated region
    $region2: #{tpu_custom_call.1} parent=1 // pred_check
      _
    $region3: #{tpu_custom_call.1} parent=1 // pred_check_branch
      %11 = sbr.rel (0) target = $region5
    $region4: #{tpu_custom_call.1} parent=1 // pred_region
      %s12 = sadd.s32 0, 0
      %p13 = scmp.lt.s32.totalorder %s12, 0
      %s14 = scalar_select %p13, %s12, 0
      %p15 = scmp.lt.s32.totalorder %s14, 0
      %s16 = scalar_select %p15, %s14, 0
      %s17 = smul.addr %s16, 8
      %s18 = scalar_lea.vmem %s0, %s17
      %s19 = sadd.s32 0, 0
      %p20 = scmp.lt.s32.totalorder %s19, 0
      %s21 = scalar_select %p20, %s19, 0
    $region5: #{tpu_custom_call.1} parent=1 // pred_fallthru
      _
    // Predicated region
    $region6: #{tpu_custom_call.1} parent=1 // pred_check
      _
    $region7: #{tpu_custom_call.1} parent=1 // pred_check_branch
      %23 = sbr.rel (0) target = $region9
    $region8: #{tpu_custom_call.1} parent=1 // pred_region
      %s24 = sadd.s32 0, 0
      %p25 = scmp.lt.s32.totalorder %s24, 0
      %s26 = scalar_select %p25, %s24, 0
      %s28 = ssub.s32 128, 128
      %29 = vsyncadd [#allocation4], %s28
      %s30 = smul.addr %s26, 128
      %s31 = scalar_lea.hbm %s1, %s30
      %s33 = sshll.u32 [#allocation3], 4
      %s34 = int_to_ptr.vmem [resolvable:$true] %s33
      %36 = dma.hbm_to_vmem [thread:$0]  %s31, 128, %s34, [#allocation4]
    $region9: #{tpu_custom_call.1} parent=1 // pred_fallthru
      _
    // Predicated region
    $region10: #{tpu_custom_call.1} parent=1 // pred_check
      _
    $region11: #{tpu_custom_call.1} parent=1 // pred_check_branch
      %38 = sbr.rel (0) target = $region13
    $region12: #{tpu_custom_call.1} parent=1 // pred_region
      %s39 = sadd.s32 0, 0
      %p40 = scmp.lt.s32.totalorder %s39, 0
      %s41 = scalar_select %p40, %s39, 0
      %p42 = scmp.lt.s32.totalorder %s41, 0
      %s43 = scalar_select %p42, %s41, 0
      %s44 = smul.addr %s43, 8
      %s45 = scalar_lea.vmem %s2, %s44
      %s46 = sadd.s32 0, 0
      %p47 = scmp.lt.s32.totalorder %s46, 0
      %s48 = scalar_select %p47, %s46, 0
    $region13: #{tpu_custom_call.1} parent=1 // pred_fallthru
      _
    // Predicated region
    $region14: #{tpu_custom_call.1} parent=1 // pred_check
      _
    $region15: #{tpu_custom_call.1} parent=1 // pred_check_branch
      %50 = sbr.rel (0) target = $region17
    $region16: #{tpu_custom_call.1} parent=1 // pred_region
      %51 = dma.done [#allocation4], 128
    $region17: #{tpu_custom_call.1} parent=1 // pred_fallthru
      _
    %s52 = sadd.s32 0, 0
    %p53 = scmp.lt.s32.totalorder %s52, 0
    %s54 = scalar_select %p53, %s52, 0
    %p55 = scmp.lt.s32.totalorder %s54, 0
    %s56 = scalar_select %p55, %s54, 0
    %s57 = smul.addr %s56, 8
    %s58 = scalar_lea.vmem %s0, %s57
    %s59 = sadd.s32 0, 0
    %p60 = scmp.lt.s32.totalorder %s59, 0
    %s61 = scalar_select %p60, %s59, 0
    %p62 = scmp.lt.s32.totalorder %s61, 0
    %s63 = scalar_select %p62, %s61, 0
    %s64 = smul.addr %s63, 8
    %s65 = scalar_lea.vmem %s2, %s64
    %s66 = sadd.s32 0, 0
    %p67 = scmp.lt.s32.totalorder %s66, 0
    %s68 = scalar_select %p67, %s66, 0
    %p69 = scmp.lt.s32.totalorder %s68, 0
    %s70 = scalar_select %p69, %s68, 0
    %s71 = smul.addr %s70, 8
    %s72 = scalar_lea.vmem %s0, %s71
    %s73 = sadd.s32 0, 0
    %p74 = scmp.lt.s32.totalorder %s73, 0
    %s75 = scalar_select %p74, %s73, 0
    %s76 = sadd.s32 0, 0
    %p77 = scmp.lt.s32.totalorder %s76, 0
    %s78 = scalar_select %p77, %s76, 0
    %s79 = sadd.s32 0, 0
    %p80 = scmp.lt.s32.totalorder %s79, 0
    %s81 = scalar_select %p80, %s79, 0
    %p82 = scmp.lt.s32.totalorder %s81, 0
    %s83 = scalar_select %p82, %s81, 0
    %s84 = smul.addr %s83, 8
    %s85 = scalar_lea.vmem %s2, %s84
    %s86 = sadd.s32 0, 0
    %p87 = scmp.lt.s32.totalorder %s86, 0
    %s88 = scalar_select %p87, %s86, 0
    %p89 = scmp.eq.s32.totalorder 0, 0
    // Predicated region
    $region18: #{tpu_custom_call.1} parent=1 // pred_check
      %p90 = pneg %p89
    $region19: #{tpu_custom_call.1} parent=1 // pred_check_branch
      %92 = sbr.rel (%p90) target = $region21
    $region20: #{tpu_custom_call.1} parent=1 // pred_region
      %vm93 = vcmask 7168
      %94 = vst.msk [vmem:[#allocation2] sm:$0xff] %vm93, 0.0
    $region21: #{tpu_custom_call.1} parent=1 // pred_fallthru
      _
    %v95 = vld [vmem:[%s72] sm:$0xff]
    %v96 = vld [vmem:[#allocation3] sm:$0xff]
    %v97 = vld [vmem:[%s85] sm:$0xff]
    %v98 = vsub.f32 %v95, %v96
    %v99 = vadd.f32 %v98, 1e-06
    %v100 = vmul.f32 %v99, %v99
    %vm101 = vcmask 261120
    %v102 = vsel %vm101, %v100, 0.0
    %103 = vadd.xlane.f32.xlu0 %v102
    %v104 = vpop.xlane.xlu0 %103
    %v105 = vrsqrt.pop %v104
    %v106 = vmul.f32 %v104, %v105
    %vm107 = vcmp.eq.f32.partialorder %v104, inf
    %v108 = vsel %vm107, %v104, %v106
    %vm109 = vcmp.eq.f32.partialorder %v104, 0.0
    %v110 = vand.u32 %v104, 2147483648
    %v111 = vsel %vm109, %v110, %v108
    %v112 = vsub.f32 2.0, %v111
    %v113 = vmax.f32 %v112, 0.0
    %v114 = vmul.f32 %v97, %v104
    %v115 = vsub.f32 1.0, %v97
    %v116 = vmul.f32 %v113, %v113
    %v117 = vmul.f32 %v115, %v116
    %v118 = vadd.f32 %v114, %v117
    %s119 = sadd.s32 0, 0
    %v120 = vlaneseq
    %v121 = vshrl.u32 %v120, 7
    %s122 = smul.u32 %s119, 8
    %v123 = vstv %s122
    %v124 = vadd.s32 %v121, %v123
    %vm125 = vcmp.lt.s32.totalorder %v124, 8
    %v126 = vsel %vm125, %v118, 0.0
    %v127 = vld [vmem:[#allocation2] sm:$0xff]
    %v128 = vadd.f32 %v127, %v126
    %vm129 = vcmask 7168
    %130 = vst.msk [vmem:[#allocation2] sm:$0xff] %vm129, %v128
    // Predicated region
    $region22: #{tpu_custom_call.1} parent=1 // pred_check
      %p131 = pneg %p89
    $region23: #{tpu_custom_call.1} parent=1 // pred_check_branch
      %133 = sbr.rel (%p131) target = $region25
    $region24: #{tpu_custom_call.1} parent=1 // pred_region
      %v134 = vld [vmem:[#allocation2] sm:$0xff]
      %v135 = vsel %vm129, %v134, 0.0
      %v136 = vrot.slane %v135, 4
      %v137 = vadd.f32 %v135, %v136
      %v138 = vrot.slane %v137, 2
      %v139 = vadd.f32 %v137, %v138
      %v140 = vrot.slane %v139, 1
      %v141 = vadd.f32 %v139, %v140
      %vm142 = vcmask 0
      %143 = vst.msk [vmem:[#allocation6] sm:$0x1] %vm142, %v141
    $region25: #{tpu_custom_call.1} parent=1 // pred_fallthru
      _
    // Predicated region
    $region26: #{tpu_custom_call.1} parent=1 // pred_check
      _
    $region27: #{tpu_custom_call.1} parent=1 // pred_check_branch
      %145 = sbr.rel (0) target = $region29
    $region28: #{tpu_custom_call.1} parent=1 // pred_region
      %s147 = ssub.s32 16, 16
      %148 = vsyncadd [#allocation5], %s147
      %s150 = sshll.u32 [#allocation6], 4
      %s151 = int_to_ptr.vmem [resolvable:$true] %s150
      %153 = dma.vmem_to_hbm [thread:$0]  %s151, 16, %s3, [#allocation5]
    $region29: #{tpu_custom_call.1} parent=1 // pred_fallthru
      _
    // Predicated region
    $region30: #{tpu_custom_call.1} parent=1 // pred_check
      _
    $region31: #{tpu_custom_call.1} parent=1 // pred_check_branch
      %155 = sbr.rel (0) target = $region33
    $region32: #{tpu_custom_call.1} parent=1 // pred_region
      %156 = dma.done [#allocation5], 16
    $region33: #{tpu_custom_call.1} parent=1 // pred_fallthru
      _
    %157 = vsyncpa [#allocation4], 1
    %158 = vsyncpa [#allocation5], 1

</llo_original>
